<compile_context>
chip_gen: v6e
topology: v6e:2x2x1
jax: 0.10.0
libtpu: 0.0.40
codegen_flags: <defaults>
</compile_context>

<pallas_src>
import jax
import jax.numpy as jnp
from jax.experimental import pallas as pl
from jax.experimental.pallas import tpu as pltpu


def _conv_bias_prelu_kernel(alpha_ref, a_ref, w_ref, b_ref, o_ref):
    """One (tm, K) x (K, Cout) MXU matmul tile + bias + PReLU.

    alpha_ref : SMEM (1,)        shared PReLU slope
    a_ref     : VMEM (tm, K)     im2col'd input rows (compute dtype)
    w_ref     : VMEM (K, Cout)   folded conv weights (compute dtype)
    b_ref     : VMEM (1, Cout)   conv bias (f32)
    o_ref     : VMEM (tm, Cout)  conv + PReLU output (pre pixel-shuffle)
    """
    # Single MXU matmul, f32 accumulation held in vregs (no scratch RMW).
    acc = jnp.dot(a_ref[...], w_ref[...], preferred_element_type=jnp.float32)
    y = acc + b_ref[...]                     # bias (f32)
    alpha = alpha_ref[0]
    y = jnp.where(y >= 0, y, alpha * y)      # PReLU, single shared alpha (f32)
    o_ref[...] = y.astype(o_ref.dtype)       # one dense store per tile


def subpixel_convolutional_block(x_nchw, weight_oihw, bias, alpha, *,
                                 kernel_size=3, scaling_factor=2,
                                 compute_dtype=jnp.bfloat16, tm=256):
    """Forward pass matching the PyTorch module. Input/output in NCHW."""
    N, Cin, H, W = x_nchw.shape
    Cout = weight_oihw.shape[0]
    r = scaling_factor
    C = Cout // (r * r)
    KH = KW = kernel_size
    pad = kernel_size // 2
    K = KH * KW * Cin
    M = N * H * W

    # --- glue: NCHW -> NHWC, zero-pad, im2col -> lane-dense (M, K) operand ----
    x_nhwc = jnp.transpose(x_nchw, (0, 2, 3, 1))
    x_pad = jnp.pad(x_nhwc, ((0, 0), (pad, pad), (pad, pad), (0, 0)))
    taps = [x_pad[:, ky:ky + H, kx:kx + W, :]            # (N, H, W, Cin) per tap
            for ky in range(KH) for kx in range(KW)]
    a_mat = jnp.stack(taps, axis=3).reshape(M, K).astype(compute_dtype)

    # weights folded to (K, Cout) with matching (ky, kx, cin) ordering
    w_mat = jnp.transpose(weight_oihw, (2, 3, 1, 0)).reshape(K, Cout)
    w_mat = w_mat.astype(compute_dtype)
    b2 = bias.reshape(1, Cout).astype(jnp.float32)
    alpha1 = alpha.reshape(1).astype(jnp.float32)

    # --- tile M; pad rows so the grid divides evenly --------------------------
    tm = max(8, min(tm, ((M + 7) // 8) * 8))
    m_pad = pl.cdiv(M, tm) * tm
    if m_pad != M:
        a_mat = jnp.pad(a_mat, ((0, m_pad - M), (0, 0)))

    # --- Pallas hot path: matmul + bias + PReLU --------------------------------
    conv_out = pl.pallas_call(
        _conv_bias_prelu_kernel,
        out_shape=jax.ShapeDtypeStruct((m_pad, Cout), x_nchw.dtype),
        grid_spec=pltpu.PrefetchScalarGridSpec(
            num_scalar_prefetch=0,
            grid=(m_pad // tm,),
            in_specs=[
                pl.BlockSpec(memory_space=pltpu.MemorySpace.SMEM),   # alpha
                pl.BlockSpec((tm, K), lambda m: (m, 0)),             # im2col rows
                pl.BlockSpec((K, Cout), lambda m: (0, 0)),           # weights
                pl.BlockSpec((1, Cout), lambda m: (0, 0)),           # bias
            ],
            out_specs=pl.BlockSpec((tm, Cout), lambda m: (m, 0)),
        ),
        compiler_params=pltpu.CompilerParams(
            dimension_semantics=("parallel",)),
    )(alpha1, a_mat, w_mat, b2)

    # --- glue: drop pad rows, pixel shuffle (pure permutation), back to NCHW ---
    y = conv_out[:M].reshape(N, H, W, C, r, r)     # channel = c*r*r + i*r + j
    y = jnp.transpose(y, (0, 3, 1, 4, 2, 5))       # (N, C, H, i, W, j)
    return y.reshape(N, C, H * r, W * r)


def _reference(x_nchw, weight_oihw, bias, alpha, *, scaling_factor=2):
    """Pure-JAX f32 reference (lax conv + pixel shuffle + PReLU) for validation."""
    N, Cin, H, W = x_nchw.shape
    Cout = weight_oihw.shape[0]
    r = scaling_factor
    C = Cout // (r * r)
    conv = jax.lax.conv_general_dilated(
        x_nchw, weight_oihw, window_strides=(1, 1), padding="SAME",
        dimension_numbers=("NCHW", "OIHW", "NCHW"))
    conv = conv + bias[None, :, None, None]
    y = conv.reshape(N, C, r, r, H, W)
    y = jnp.transpose(y, (0, 1, 4, 2, 5, 3)).reshape(N, C, H * r, W * r)
    return jnp.where(y >= 0, y, alpha * y)


if __name__ == "__main__":
    # Small, module-consistent shapes. n_channels=32 -> Cout=128 so output tiles
    # are lane-dense; M = N*H*W = 512 -> 2 parallel grid steps of tm=256.
    N, n_channels, H, W = 2, 32, 16, 16
    kernel_size, scaling_factor = 3, 2
    Cout = n_channels * scaling_factor ** 2

    key = jax.random.PRNGKey(0)
    kx_, kw_, kb_ = jax.random.split(key, 3)
    x = jax.random.normal(kx_, (N, n_channels, H, W), dtype=jnp.float32)
    weight = 0.1 * jax.random.normal(
        kw_, (Cout, n_channels, kernel_size, kernel_size), dtype=jnp.float32)
    bias = 0.1 * jax.random.normal(kb_, (Cout,), dtype=jnp.float32)
    alpha = jnp.array(0.25, dtype=jnp.float32)   # nn.PReLU() default init

    ref = _reference(x, weight, bias, alpha, scaling_factor=scaling_factor)

    # Default bf16-MXU path (f32 accumulate); tolerance sized for bf16 operands.
    out = subpixel_convolutional_block(
        x, weight, bias, alpha,
        kernel_size=kernel_size, scaling_factor=scaling_factor)
    out = jax.block_until_ready(out)
    assert out.shape == (N, n_channels, H * scaling_factor, W * scaling_factor), out.shape
    assert jnp.allclose(out, ref, rtol=5e-2, atol=5e-2), \
        float(jnp.max(jnp.abs(out - ref)))

    # f32 compute path for exact module semantics (tight tolerance).
    out_f32 = subpixel_convolutional_block(
        x, weight, bias, alpha,
        kernel_size=kernel_size, scaling_factor=scaling_factor,
        compute_dtype=jnp.float32)
    out_f32 = jax.block_until_ready(out_f32)
    assert jnp.allclose(out_f32, ref, rtol=1e-4, atol=1e-4), \
        float(jnp.max(jnp.abs(out_f32 - ref)))

    print("KERNEL_OK")
</pallas_src>

<mosaic_0001>
module attributes {stable_mosaic.version = 11 : i64} {
  func.func @_conv_bias_prelu_kernel(%arg0: i32, %arg1: memref<1xf32, #tpu.memory_space<smem>>, %arg2: memref<256x288xbf16, #tpu.memory_space<vmem>>, %arg3: memref<288x128xbf16, #tpu.memory_space<vmem>>, %arg4: memref<1x128xf32, #tpu.memory_space<vmem>>, %arg5: memref<256x128xf32, #tpu.memory_space<vmem>>) attributes {dimension_semantics = [#tpu.dimension_semantics<parallel>], iteration_bounds = array<i64: 2>, scalar_prefetch = 0 : i64, scratch_operands = 0 : i64, tpu.core_type = #tpu.core_type<tc>, window_params = [{transform_indices = @transform_0, window_bounds = array<i64: 1>}, {transform_indices = @transform_1, window_bounds = array<i64: 256, 288>}, {pipeline_mode = #tpu.pipeline_mode<synchronous>, transform_indices = @transform_2, window_bounds = array<i64: 288, 128>}, {pipeline_mode = #tpu.pipeline_mode<synchronous>, transform_indices = @transform_3, window_bounds = array<i64: 1, 128>}, {transform_indices = @transform_4, window_bounds = array<i64: 256, 128>}]} {
    %c0 = arith.constant 0 : index
    %c0_0 = arith.constant 0 : index
    %0 = vector.load %arg2[%c0, %c0_0] : memref<256x288xbf16, #tpu.memory_space<vmem>>, vector<256x288xbf16>
    %c0_1 = arith.constant 0 : index
    %c0_2 = arith.constant 0 : index
    %1 = vector.load %arg3[%c0_1, %c0_2] : memref<288x128xbf16, #tpu.memory_space<vmem>>, vector<288x128xbf16>
    %cst = arith.constant dense<0.000000e+00> : vector<256x128xf32>
    %2 = tpu.matmul %0, %1, %cst {dimension_numbers = #tpu.dot_dimension_numbers<[1], [0], [0], [1], [0, 0, 1, 1], [], []>} : vector<256x288xbf16>, vector<288x128xbf16>, vector<256x128xf32> -> vector<256x128xf32>
    %c0_3 = arith.constant 0 : index
    %c0_4 = arith.constant 0 : index
    %3 = vector.load %arg4[%c0_3, %c0_4] : memref<1x128xf32, #tpu.memory_space<vmem>>, vector<1x128xf32>
    %4 = vector.broadcast %3 : vector<1x128xf32> to vector<256x128xf32>
    %5 = arith.addf %2, %4 : vector<256x128xf32>
    %c0_5 = arith.constant 0 : index
    %6 = memref.load %arg1[%c0_5] : memref<1xf32, #tpu.memory_space<smem>>
    %cst_6 = arith.constant 0.000000e+00 : f32
    %7 = vector.broadcast %cst_6 : f32 to vector<256x128xf32>
    %8 = arith.cmpf oge, %5, %7 : vector<256x128xf32>
    %9 = vector.broadcast %6 : f32 to vector<256x128xf32>
    %10 = arith.mulf %9, %5 : vector<256x128xf32>
    %11 = arith.select %8, %5, %10 : vector<256x128xi1>, vector<256x128xf32>
    %c0_7 = arith.constant 0 : index
    %c0_8 = arith.constant 0 : index
    %12 = vector.load %arg5[%c0_7, %c0_8] : memref<256x128xf32, #tpu.memory_space<vmem>>, vector<256x128xf32>
    tpu.vector_store %arg5[%c0_7, %c0_8], %11 {strides = array<i32>} : memref<256x128xf32, #tpu.memory_space<vmem>>, vector<256x128xf32>,
    return
  }
  func.func @transform_0(%arg0: i32) -> i32 {
    %c0_i32 = arith.constant 0 : i32
    %c0_i32_0 = arith.constant 0 : i32
    return %c0_i32 : i32
  }
  func.func @transform_1(%arg0: i32) -> (i32, i32) {
    %c0_i32 = arith.constant 0 : i32
    %c0_i32_0 = arith.constant 0 : i32
    return %arg0, %c0_i32 : i32, i32
  }
  func.func @transform_2(%arg0: i32) -> (i32, i32) {
    %c0_i32 = arith.constant 0 : i32
    %c0_i32_0 = arith.constant 0 : i32
    %c0_i32_1 = arith.constant 0 : i32
    return %c0_i32, %c0_i32_0 : i32, i32
  }
  func.func @transform_3(%arg0: i32) -> (i32, i32) {
    %c0_i32 = arith.constant 0 : i32
    %c0_i32_0 = arith.constant 0 : i32
    %c0_i32_1 = arith.constant 0 : i32
    return %c0_i32, %c0_i32_0 : i32, i32
  }
  func.func @transform_4(%arg0: i32) -> (i32, i32) {
    %c0_i32 = arith.constant 0 : i32
    %c0_i32_0 = arith.constant 0 : i32
    return %arg0, %c0_i32 : i32, i32
  }
}

</mosaic_0001>

<llo_original>
// kernel: tpu_custom_call.1
$region0: #{tpu_custom_call.1}
  #allocation0 [shape = 'u32[]', space=smem, size = 0x4, offset = 0x4, fixed_abs, tag = 'smem constant byte address 0x4 - core index']
  #allocation1 [shape = 'u32[144,128]{1,0:T(1,128)}', space=vmem, size = 0x12000, scoped, tag = 'internal scratch']
  #allocation2 [shape = 'f32[1]{0:T(128)S(6)}', space=smem, size = 0x200, scoped, tag = 'scoped memory for tpu_custom_call.1']
  %s0 = inlined_call_operand.<no memory space> [shape: f32[1], index: 0, kind: input, shape index: {}]
  %s1 = inlined_call_operand.vmem [shape: bf16[512,288], index: 1, kind: input, shape index: {}]
  %s2 = inlined_call_operand.vmem [shape: bf16[288,128], index: 2, kind: input, shape index: {}]
  %s3 = inlined_call_operand.vmem [shape: f32[1,128], index: 3, kind: input, shape index: {}]
  %s4 = inlined_call_operand.hbm [shape: f32[512,128], index: 4, kind: output, shape index: {}]
  %s5 = sld [smem:[#allocation0]]
  $region49: #{tpu_custom_call.1} parent=0
    _
  %s7 = ssub.s32 1, %s5
  %s8 = scalar_select 0, %s7, %s5
  %9 = sst [smem:[#allocation2]] %s0
  $region1: #{tpu_custom_call.1} parent=0
    #allocation3 [shape = 'u8[262144]{0}', space=vmem, size = 0x40000, scoped, tag = 'output window, operand 0']
    #allocation4 [shape = 's32[2]{0}', space=sflag, size = 0x8, scoped, tag = 'scoped memory for tpu_custom_call.1']
    %10 = vsyncpa [#allocation4], 0
    %s11 = scalar_lea.sflag [#allocation4], 1
    %12 = vsyncpa %s11, 0
    loop: start=0, step=1, limit=4
    $region2: #{tpu_custom_call.1} parent=1 // loop_pre_header
      _
    $region3: #{tpu_custom_call.1} parent=1 // loop_header
      %s14 = sphi 0, %s18
      %p15 = scmp.ge.s32.totalorder %s14, 4
      %s22 = sphi 0, %s22
      %s24 = sphi 0, %s22
      %s25 = sphi 0, %s24
      %s39 = sphi 0, %s25
      %s45 = sphi 0, %s47
      %s48 = sphi 0, %s45
      %s49 = sphi 0, %s48
      %s65 = sphi 0, %s49
      %s69 = sphi 0, %s69
      %s71 = sphi 0, %s69
      %s72 = sphi 0, %s71
      %s86 = sphi 0, %s72
      %s90 = sphi 0, %s90
      %s92 = sphi 0, %s90
      %s93 = sphi 0, %s92
      %s107 = sphi 0, %s93
      %s113 = sphi 0, %s115
      %s116 = sphi 0, %s113
      %s117 = sphi 0, %s116
      %s133 = sphi 0, %s117
    $region4: #{tpu_custom_call.1} parent=1 // loop_header_branch
      %17 = sbr.rel (%p15) target = $region8
    $region5: #{tpu_custom_call.1} parent=1 // loop_body
      %s19 = ssub.s32 %s14, 1
      %s20 = ssub.s32 %s14, 2
      %s21 = sadd.s32 %s14, 1
      %s23 = sadd.s32 %s22, 1
      %p26 = scmp.eq.s32.totalorder %s14, 1
      %p27 = scmp.ne.s32.totalorder %s22, %s24
      %p28 = scmp.eq.s32.totalorder %s14, 0
      %p29 = por %p27, %p28
      %p30 = scmp.ne.s32.totalorder %s22, %s24
      %p31 = scmp.eq.s32.totalorder %s19, 1
      %p32 = por %p30, %p31
      %p33 = scmp.ne.s32.totalorder %s24, %s25
      %p34 = scmp.eq.s32.totalorder %s19, 0
      %p35 = por %p33, %p34
      %p36 = scmp.ne.s32.totalorder %s24, %s25
      %p37 = scmp.eq.s32.totalorder %s20, 1
      %p38 = por %p36, %p37
      %p40 = scmp.ne.s32.totalorder %s25, %s39
      %p41 = scmp.eq.s32.totalorder %s20, 0
      %p42 = por %p40, %p41
      %s43 = ssub.s32 %s14, %s21
      %p44 = scmp.eq.s32.totalorder %s43, 0
      %s46 = sadd.s32 %s45, 1
      %s47 = scalar_select %p44, %s45, %s46
      %p50 = pneg %p44
      %p51 = scmp.eq.s32.totalorder %s14, 1
      %p52 = por %p50, %p51
      %p53 = scmp.ne.s32.totalorder %s45, %s48
      %p54 = scmp.eq.s32.totalorder %s14, 0
      %p55 = por %p53, %p54
      %p56 = scmp.ne.s32.totalorder %s45, %s48
      %p57 = scmp.eq.s32.totalorder %s19, 1
      %p58 = por %p56, %p57
      %p59 = scmp.ne.s32.totalorder %s48, %s49
      %p60 = scmp.eq.s32.totalorder %s19, 0
      %p61 = por %p59, %p60
      %p62 = scmp.ne.s32.totalorder %s48, %s49
      %p63 = scmp.eq.s32.totalorder %s20, 1
      %p64 = por %p62, %p63
      %p66 = scmp.ne.s32.totalorder %s49, %s65
      %p67 = scmp.eq.s32.totalorder %s20, 0
      %p68 = por %p66, %p67
      %s70 = sadd.s32 %s69, 1
      %p73 = scmp.eq.s32.totalorder %s14, 1
      %p74 = scmp.ne.s32.totalorder %s69, %s71
      %p75 = scmp.eq.s32.totalorder %s14, 0
      %p76 = por %p74, %p75
      %p77 = scmp.ne.s32.totalorder %s69, %s71
      %p78 = scmp.eq.s32.totalorder %s19, 1
      %p79 = por %p77, %p78
      %p80 = scmp.ne.s32.totalorder %s71, %s72
      %p81 = scmp.eq.s32.totalorder %s19, 0
      %p82 = por %p80, %p81
      %p83 = scmp.ne.s32.totalorder %s71, %s72
      %p84 = scmp.eq.s32.totalorder %s20, 1
      %p85 = por %p83, %p84
      %p87 = scmp.ne.s32.totalorder %s72, %s86
      %p88 = scmp.eq.s32.totalorder %s20, 0
      %p89 = por %p87, %p88
      %s91 = sadd.s32 %s90, 1
      %p94 = scmp.eq.s32.totalorder %s14, 1
      %p95 = scmp.ne.s32.totalorder %s90, %s92
      %p96 = scmp.eq.s32.totalorder %s14, 0
      %p97 = por %p95, %p96
      %p98 = scmp.ne.s32.totalorder %s90, %s92
      %p99 = scmp.eq.s32.totalorder %s19, 1
      %p100 = por %p98, %p99
      %p101 = scmp.ne.s32.totalorder %s92, %s93
      %p102 = scmp.eq.s32.totalorder %s19, 0
      %p103 = por %p101, %p102
      %p104 = scmp.ne.s32.totalorder %s92, %s93
      %p105 = scmp.eq.s32.totalorder %s20, 1
      %p106 = por %p104, %p105
      %p108 = scmp.ne.s32.totalorder %s93, %s107
      %p109 = scmp.eq.s32.totalorder %s20, 0
      %p110 = por %p108, %p109
      %s111 = ssub.s32 %s14, %s21
      %p112 = scmp.eq.s32.totalorder %s111, 0
      %s114 = sadd.s32 %s113, 1
      %s115 = scalar_select %p112, %s113, %s114
      %p118 = pneg %p112
      %p119 = scmp.eq.s32.totalorder %s14, 1
      %p120 = por %p118, %p119
      %p121 = scmp.ne.s32.totalorder %s113, %s116
      %p122 = scmp.eq.s32.totalorder %s14, 0
      %p123 = por %p121, %p122
      %p124 = scmp.ne.s32.totalorder %s113, %s116
      %p125 = scmp.eq.s32.totalorder %s19, 1
      %p126 = por %p124, %p125
      %p127 = scmp.ne.s32.totalorder %s116, %s117
      %p128 = scmp.eq.s32.totalorder %s19, 0
      %p129 = por %p127, %p128
      %p130 = scmp.ne.s32.totalorder %s116, %s117
      %p131 = scmp.eq.s32.totalorder %s20, 1
      %p132 = por %p130, %p131
      %p134 = scmp.ne.s32.totalorder %s117, %s133
      %p135 = scmp.eq.s32.totalorder %s20, 0
      %p136 = por %p134, %p135
      %p137 = scmp.le.s32.totalorder 1, %s14
      %p138 = scmp.lt.s32.totalorder %s14, 3
      %p139 = pnand %p137, %p138
      %p140 = pneg %p139
      // Predicated region
      $region9: #{tpu_custom_call.1} parent=5 // pred_check
        _
      $region10: #{tpu_custom_call.1} parent=5 // pred_check_branch
        %142 = sbr.rel (%p139) target = $region12
      $region11: #{tpu_custom_call.1} parent=5 // pred_region
        %s143 = ssub.s32 %s14, 1
        // Predicated region
        $region13: #{tpu_custom_call.1} parent=11 // pred_check
          %p144 = pneg %p35
        $region14: #{tpu_custom_call.1} parent=11 // pred_check_branch
          %146 = sbr.rel (%p144) target = $region16
        $region15: #{tpu_custom_call.1} parent=11 // pred_region
          _
        $region16: #{tpu_custom_call.1} parent=11 // pred_fallthru
          _
        // Predicated region
        $region17: #{tpu_custom_call.1} parent=11 // pred_check
          %p147 = pneg %p82
        $region18: #{tpu_custom_call.1} parent=11 // pred_check_branch
          %149 = sbr.rel (%p147) target = $region20
        $region19: #{tpu_custom_call.1} parent=11 // pred_region
          _
        $region20: #{tpu_custom_call.1} parent=11 // pred_fallthru
          _
        // Predicated region
        $region21: #{tpu_custom_call.1} parent=11 // pred_check
          %p150 = pneg %p103
        $region22: #{tpu_custom_call.1} parent=11 // pred_check_branch
          %152 = sbr.rel (%p150) target = $region24
        $region23: #{tpu_custom_call.1} parent=11 // pred_region
          _
        $region24: #{tpu_custom_call.1} parent=11 // pred_fallthru
          _
      $region12: #{tpu_custom_call.1} parent=5 // pred_fallthru
        _
      %p153 = scmp.lt.s32.totalorder %s14, 2
      // Predicated region
      $region25: #{tpu_custom_call.1} parent=5 // pred_check
        %p154 = pneg %p153
      $region26: #{tpu_custom_call.1} parent=5 // pred_check_branch
        %156 = sbr.rel (%p154) target = $region28
      $region27: #{tpu_custom_call.1} parent=5 // pred_region
        // Predicated region
        $region29: #{tpu_custom_call.1} parent=27 // pred_check
          %p157 = pneg %p55
        $region30: #{tpu_custom_call.1} parent=27 // pred_check_branch
          %159 = sbr.rel (%p157) target = $region32
        $region31: #{tpu_custom_call.1} parent=27 // pred_region
          %s160 = smul.u32 32, %s14
          %p161 = scmp.lt.s32.totalorder %s160, 63
          %s162 = scalar_select %p161, %s160, 63
          %s163 = smul.addr %s162, 3
          %s164 = smul.addr %s163, 4
          %s165 = scalar_lea.vmem %s1, %s164
          %s166 = smul.u32 32, %s14
        $region32: #{tpu_custom_call.1} parent=27 // pred_fallthru
          _
      $region28: #{tpu_custom_call.1} parent=5 // pred_fallthru
        _
      %p167 = scmp.le.s32.totalorder 1, %s14
      %p168 = scmp.lt.s32.totalorder %s14, 3
      %p169 = pnand %p167, %p168
      %p170 = pneg %p169
      // Predicated region
      $region33: #{tpu_custom_call.1} parent=5 // pred_check
        _
      $region34: #{tpu_custom_call.1} parent=5 // pred_check_branch
        %172 = sbr.rel (%p169) target = $region36
      $region35: #{tpu_custom_call.1} parent=5 // pred_region
        %s173 = ssub.s32 %s14, 1
        %p174 = pneg %p35
        %p175 = pneg %p32
        %s176 = smul.u32 32, %s19
        %p177 = scmp.lt.s32.totalorder %s176, 63
        %s178 = scalar_select %p177, %s176, 63
        %s179 = smul.addr %s178, 3
        %s180 = smul.addr %s179, 4
        %s181 = scalar_lea.vmem %s1, %s180
        %p182 = pneg %p61
        %p183 = pneg %p58
        %p184 = pneg %p82
        %p185 = pneg %p79
        %p186 = pneg %p103
        %p187 = pneg %p100
        %p188 = pneg %p129
        %p189 = pneg %p126
        %s190 = sand.u32 %s116, 1
        %s191 = scalar_lea.sflag [#allocation4], %s190
        %s192 = sand.u32 %s116, 1
        %s193 = smul.addr %s192, 256
        %s194 = scalar_lea.vmem [#allocation3], %s193
        %s195 = smul.u32 32, %s19
        %p196 = scmp.lt.s32.totalorder %s195, 63
        %s197 = scalar_select %p196, %s195, 63
        %s198 = smul.addr %s197, 3
        %s199 = smul.addr %s198, 4
        %s200 = scalar_lea.vmem %s1, %s199
        %s201 = smul.u32 32, %s19
        %s202 = smul.u32 32, %s19
        %v204 = vld [vmem:[%s200] sm:$0xff]
        %v205 = vld [vmem:[%s200 + $0x8] sm:$0xf]
        %v206 = vld [vmem:[%s200 + $0xc] sm:$0xff]
        %v207 = vld [vmem:[%s200 + $0x14] sm:$0xf]
        %v208 = vld [vmem:[%s200 + $0x18] sm:$0xff]
        %v209 = vld [vmem:[%s200 + $0x20] sm:$0xf]
        %v210 = vld [vmem:[%s200 + $0x24] sm:$0xff]
        %v211 = vld [vmem:[%s200 + $0x2c] sm:$0xf]
        %v212 = vld [vmem:[%s200 + $0x30] sm:$0xff]
        %v213 = vld [vmem:[%s200 + $0x38] sm:$0xf]
        %v214 = vld [vmem:[%s200 + $0x3c] sm:$0xff]
        %v215 = vld [vmem:[%s200 + $0x44] sm:$0xf]
        %v216 = vld [vmem:[%s200 + $0x48] sm:$0xff]
        %v217 = vld [vmem:[%s200 + $0x50] sm:$0xf]
        %v218 = vld [vmem:[%s200 + $0x54] sm:$0xff]
        %v219 = vld [vmem:[%s200 + $0x5c] sm:$0xf]
        %v220 = vld [vmem:[%s200 + $0x60] sm:$0xff]
        %v221 = vld [vmem:[%s200 + $0x68] sm:$0xf]
        %v222 = vld [vmem:[%s200 + $0x6c] sm:$0xff]
        %v223 = vld [vmem:[%s200 + $0x74] sm:$0xf]
        %v224 = vld [vmem:[%s200 + $0x78] sm:$0xff]
        %v225 = vld [vmem:[%s200 + $0x80] sm:$0xf]
        %v226 = vld [vmem:[%s200 + $0x84] sm:$0xff]
        %v227 = vld [vmem:[%s200 + $0x8c] sm:$0xf]
        %v228 = vld [vmem:[%s200 + $0x90] sm:$0xff]
        %v229 = vld [vmem:[%s200 + $0x98] sm:$0xf]
        %v230 = vld [vmem:[%s200 + $0x9c] sm:$0xff]
        %v231 = vld [vmem:[%s200 + $0xa4] sm:$0xf]
        %v232 = vld [vmem:[%s200 + $0xa8] sm:$0xff]
        %v233 = vld [vmem:[%s200 + $0xb0] sm:$0xf]
        %v234 = vld [vmem:[%s200 + $0xb4] sm:$0xff]
        %v235 = vld [vmem:[%s200 + $0xbc] sm:$0xf]
        %v236 = vld [vmem:[%s200 + $0xc0] sm:$0xff]
        %v237 = vld [vmem:[%s200 + $0xc8] sm:$0xf]
        %v238 = vld [vmem:[%s200 + $0xcc] sm:$0xff]
        %v239 = vld [vmem:[%s200 + $0xd4] sm:$0xf]
        %v240 = vld [vmem:[%s200 + $0xd8] sm:$0xff]
        %v241 = vld [vmem:[%s200 + $0xe0] sm:$0xf]
        %v242 = vld [vmem:[%s200 + $0xe4] sm:$0xff]
        %v243 = vld [vmem:[%s200 + $0xec] sm:$0xf]
        %v244 = vld [vmem:[%s200 + $0xf0] sm:$0xff]
        %v245 = vld [vmem:[%s200 + $0xf8] sm:$0xf]
        %v246 = vld [vmem:[%s200 + $0xfc] sm:$0xff]
        %v247 = vld [vmem:[%s200 + $0x104] sm:$0xf]
        %v248 = vld [vmem:[%s200 + $0x108] sm:$0xff]
        %v249 = vld [vmem:[%s200 + $0x110] sm:$0xf]
        %v250 = vld [vmem:[%s200 + $0x114] sm:$0xff]
        %v251 = vld [vmem:[%s200 + $0x11c] sm:$0xf]
        %v252 = vld [vmem:[%s200 + $0x120] sm:$0xff]
        %v253 = vld [vmem:[%s200 + $0x128] sm:$0xf]
        %v254 = vld [vmem:[%s200 + $0x12c] sm:$0xff]
        %v255 = vld [vmem:[%s200 + $0x134] sm:$0xf]
        %v256 = vld [vmem:[%s200 + $0x138] sm:$0xff]
        %v257 = vld [vmem:[%s200 + $0x140] sm:$0xf]
        %v258 = vld [vmem:[%s200 + $0x144] sm:$0xff]
        %v259 = vld [vmem:[%s200 + $0x14c] sm:$0xf]
        %v260 = vld [vmem:[%s200 + $0x150] sm:$0xff]
        %v261 = vld [vmem:[%s200 + $0x158] sm:$0xf]
        %v262 = vld [vmem:[%s200 + $0x15c] sm:$0xff]
        %v263 = vld [vmem:[%s200 + $0x164] sm:$0xf]
        %v264 = vld [vmem:[%s200 + $0x168] sm:$0xff]
        %v265 = vld [vmem:[%s200 + $0x170] sm:$0xf]
        %v266 = vld [vmem:[%s200 + $0x174] sm:$0xff]
        %v267 = vld [vmem:[%s200 + $0x17c] sm:$0xf]
        %v268 = vld [vmem:[%s2] sm:$0xf]
        %v269 = vld [vmem:[%s2 + $0x4] sm:$0xf]
        %v270 = vld [vmem:[%s2 + $0x8] sm:$0xf]
        %v271 = vld [vmem:[%s2 + $0xc] sm:$0xf]
        %v272 = vld [vmem:[%s2 + $0x10] sm:$0xf]
        %v273 = vld [vmem:[%s2 + $0x14] sm:$0xf]
        %v274 = vld [vmem:[%s2 + $0x18] sm:$0xf]
        %v275 = vld [vmem:[%s2 + $0x1c] sm:$0xf]
        %v276 = vld [vmem:[%s2 + $0x20] sm:$0xf]
        %v277 = vld [vmem:[%s2 + $0x24] sm:$0xf]
        %v278 = vld [vmem:[%s2 + $0x28] sm:$0xf]
        %v279 = vld [vmem:[%s2 + $0x2c] sm:$0xf]
        %v280 = vld [vmem:[%s2 + $0x30] sm:$0xf]
        %v281 = vld [vmem:[%s2 + $0x34] sm:$0xf]
        %v282 = vld [vmem:[%s2 + $0x38] sm:$0xf]
        %v283 = vld [vmem:[%s2 + $0x3c] sm:$0xf]
        %v284 = vld [vmem:[%s2 + $0x40] sm:$0xf]
        %v285 = vld [vmem:[%s2 + $0x44] sm:$0xf]
        %v286 = vld [vmem:[%s2 + $0x48] sm:$0xf]
        %v287 = vld [vmem:[%s2 + $0x4c] sm:$0xf]
        %v288 = vld [vmem:[%s2 + $0x50] sm:$0xf]
        %v289 = vld [vmem:[%s2 + $0x54] sm:$0xf]
        %v290 = vld [vmem:[%s2 + $0x58] sm:$0xf]
        %v291 = vld [vmem:[%s2 + $0x5c] sm:$0xf]
        %v292 = vld [vmem:[%s2 + $0x60] sm:$0xf]
        %v293 = vld [vmem:[%s2 + $0x64] sm:$0xf]
        %v294 = vld [vmem:[%s2 + $0x68] sm:$0xf]
        %v295 = vld [vmem:[%s2 + $0x6c] sm:$0xf]
        %v296 = vld [vmem:[%s2 + $0x70] sm:$0xf]
        %v297 = vld [vmem:[%s2 + $0x74] sm:$0xf]
        %v298 = vld [vmem:[%s2 + $0x78] sm:$0xf]
        %v299 = vld [vmem:[%s2 + $0x7c] sm:$0xf]
        %v300 = vld [vmem:[%s2 + $0x80] sm:$0xf]
        %v301 = vld [vmem:[%s2 + $0x84] sm:$0xf]
        %v302 = vld [vmem:[%s2 + $0x88] sm:$0xf]
        %v303 = vld [vmem:[%s2 + $0x8c] sm:$0xf]
        %v304 = vld [vmem:[%s3] sm:$0x1]
        %v306 = vlaneseq
        %v307 = vshrl.u32 %v306, 7
        %v308 = vsub.s32 0, %v307
        %v309 = vrot.slane %v304, %v308
        %v375 = vunpack.c.l.b16 %v204
        %v376 = vunpack.c.h.b16 %v204
        %v377 = vunpack.c.l.b16 %v205
        %v378 = vunpack.c.l.b16 %v206
        %v379 = vunpack.c.h.b16 %v206
        %v380 = vunpack.c.l.b16 %v207
        %v381 = vunpack.c.l.b16 %v208
        %v382 = vunpack.c.h.b16 %v208
        %v383 = vunpack.c.l.b16 %v209
        %v384 = vunpack.c.l.b16 %v210
        %v385 = vunpack.c.h.b16 %v210
        %v386 = vunpack.c.l.b16 %v211
        %v387 = vunpack.c.l.b16 %v212
        %v388 = vunpack.c.h.b16 %v212
        %v389 = vunpack.c.l.b16 %v213
        %v390 = vunpack.c.l.b16 %v214
        %v391 = vunpack.c.h.b16 %v214
        %v392 = vunpack.c.l.b16 %v215
        %v393 = vunpack.c.l.b16 %v216
        %v394 = vunpack.c.h.b16 %v216
        %v395 = vunpack.c.l.b16 %v217
        %v396 = vunpack.c.l.b16 %v218
        %v397 = vunpack.c.h.b16 %v218
        %v398 = vunpack.c.l.b16 %v219
        %v399 = vunpack.c.l.b16 %v220
        %v400 = vunpack.c.h.b16 %v220
        %v401 = vunpack.c.l.b16 %v221
        %v402 = vunpack.c.l.b16 %v222
        %v403 = vunpack.c.h.b16 %v222
        %v404 = vunpack.c.l.b16 %v223
        %v405 = vunpack.c.l.b16 %v224
        %v406 = vunpack.c.h.b16 %v224
        %v407 = vunpack.c.l.b16 %v225
        %v408 = vunpack.c.l.b16 %v226
        %v409 = vunpack.c.h.b16 %v226
        %v410 = vunpack.c.l.b16 %v227
        %v411 = vunpack.c.l.b16 %v228
        %v412 = vunpack.c.h.b16 %v228
        %v413 = vunpack.c.l.b16 %v229
        %v414 = vunpack.c.l.b16 %v230
        %v415 = vunpack.c.h.b16 %v230
        %v416 = vunpack.c.l.b16 %v231
        %v417 = vunpack.c.l.b16 %v232
        %v418 = vunpack.c.h.b16 %v232
        %v419 = vunpack.c.l.b16 %v233
        %v420 = vunpack.c.l.b16 %v234
        %v421 = vunpack.c.h.b16 %v234
        %v422 = vunpack.c.l.b16 %v235
        %v423 = vunpack.c.l.b16 %v236
        %v424 = vunpack.c.h.b16 %v236
        %v425 = vunpack.c.l.b16 %v237
        %v426 = vunpack.c.l.b16 %v238
        %v427 = vunpack.c.h.b16 %v238
        %v428 = vunpack.c.l.b16 %v239
        %v429 = vunpack.c.l.b16 %v240
        %v430 = vunpack.c.h.b16 %v240
        %v431 = vunpack.c.l.b16 %v241
        %v432 = vunpack.c.l.b16 %v242
        %v433 = vunpack.c.h.b16 %v242
        %v434 = vunpack.c.l.b16 %v243
        %v435 = vunpack.c.l.b16 %v244
        %v436 = vunpack.c.h.b16 %v244
        %v437 = vunpack.c.l.b16 %v245
        %v438 = vunpack.c.l.b16 %v246
        %v439 = vunpack.c.h.b16 %v246
        %v440 = vunpack.c.l.b16 %v247
        %v441 = vunpack.c.l.b16 %v248
        %v442 = vunpack.c.h.b16 %v248
        %v443 = vunpack.c.l.b16 %v249
        %v444 = vunpack.c.l.b16 %v250
        %v445 = vunpack.c.h.b16 %v250
        %v446 = vunpack.c.l.b16 %v251
        %v447 = vunpack.c.l.b16 %v252
        %v448 = vunpack.c.h.b16 %v252
        %v449 = vunpack.c.l.b16 %v253
        %v450 = vunpack.c.l.b16 %v254
        %v451 = vunpack.c.h.b16 %v254
        %v452 = vunpack.c.l.b16 %v255
        %v453 = vunpack.c.l.b16 %v256
        %v454 = vunpack.c.h.b16 %v256
        %v455 = vunpack.c.l.b16 %v257
        %v456 = vunpack.c.l.b16 %v258
        %v457 = vunpack.c.h.b16 %v258
        %v458 = vunpack.c.l.b16 %v259
        %v459 = vunpack.c.l.b16 %v260
        %v460 = vunpack.c.h.b16 %v260
        %v461 = vunpack.c.l.b16 %v261
        %v462 = vunpack.c.l.b16 %v262
        %v463 = vunpack.c.h.b16 %v262
        %v464 = vunpack.c.l.b16 %v263
        %v465 = vunpack.c.l.b16 %v264
        %v466 = vunpack.c.h.b16 %v264
        %v467 = vunpack.c.l.b16 %v265
        %v468 = vunpack.c.l.b16 %v266
        %v469 = vunpack.c.h.b16 %v266
        %v470 = vunpack.c.l.b16 %v267
        %v471 = vpack.c.b16 %v378, %v375
        %v472 = vpack.c.b16 %v379, %v376
        %v473 = vpack.c.b16 %v380, %v377
        %v474 = vpack.c.b16 %v384, %v381
        %v475 = vpack.c.b16 %v385, %v382
        %v476 = vpack.c.b16 %v386, %v383
        %v477 = vpack.c.b16 %v390, %v387
        %v478 = vpack.c.b16 %v391, %v388
        %v479 = vpack.c.b16 %v392, %v389
        %v480 = vpack.c.b16 %v396, %v393
        %v481 = vpack.c.b16 %v397, %v394
        %v482 = vpack.c.b16 %v398, %v395
        %v483 = vpack.c.b16 %v402, %v399
        %v484 = vpack.c.b16 %v403, %v400
        %v485 = vpack.c.b16 %v404, %v401
        %v486 = vpack.c.b16 %v408, %v405
        %v487 = vpack.c.b16 %v409, %v406
        %v488 = vpack.c.b16 %v410, %v407
        %v489 = vpack.c.b16 %v414, %v411
        %v490 = vpack.c.b16 %v415, %v412
        %v491 = vpack.c.b16 %v416, %v413
        %v492 = vpack.c.b16 %v420, %v417
        %v493 = vpack.c.b16 %v421, %v418
        %v494 = vpack.c.b16 %v422, %v419
        %v495 = vpack.c.b16 %v426, %v423
        %v496 = vpack.c.b16 %v427, %v424
        %v497 = vpack.c.b16 %v428, %v425
        %v498 = vpack.c.b16 %v432, %v429
        %v499 = vpack.c.b16 %v433, %v430
        %v500 = vpack.c.b16 %v434, %v431
        %v501 = vpack.c.b16 %v438, %v435
        %v502 = vpack.c.b16 %v439, %v436
        %v503 = vpack.c.b16 %v440, %v437
        %v504 = vpack.c.b16 %v444, %v441
        %v505 = vpack.c.b16 %v445, %v442
        %v506 = vpack.c.b16 %v446, %v443
        %v507 = vpack.c.b16 %v450, %v447
        %v508 = vpack.c.b16 %v451, %v448
        %v509 = vpack.c.b16 %v452, %v449
        %v510 = vpack.c.b16 %v456, %v453
        %v511 = vpack.c.b16 %v457, %v454
        %v512 = vpack.c.b16 %v458, %v455
        %v513 = vpack.c.b16 %v462, %v459
        %v514 = vpack.c.b16 %v463, %v460
        %v515 = vpack.c.b16 %v464, %v461
        %v516 = vpack.c.b16 %v468, %v465
        %v517 = vpack.c.b16 %v469, %v466
        %v518 = vpack.c.b16 %v470, %v467
        %v587 = vunpack.c.l.b16 %v268
        %v588 = vunpack.c.l.b16 %v269
        %v589 = vunpack.c.l.b16 %v270
        %v590 = vunpack.c.l.b16 %v271
        %v591 = vunpack.c.l.b16 %v272
        %v592 = vunpack.c.l.b16 %v273
        %v593 = vunpack.c.l.b16 %v274
        %v594 = vunpack.c.l.b16 %v275
        %v595 = vunpack.c.l.b16 %v276
        %v596 = vunpack.c.l.b16 %v277
        %v597 = vunpack.c.l.b16 %v278
        %v598 = vunpack.c.l.b16 %v279
        %v599 = vunpack.c.l.b16 %v280
        %v600 = vunpack.c.l.b16 %v281
        %v601 = vunpack.c.l.b16 %v282
        %v602 = vunpack.c.l.b16 %v283
        %v603 = vunpack.c.l.b16 %v284
        %v604 = vunpack.c.l.b16 %v285
        %v605 = vunpack.c.l.b16 %v286
        %v606 = vunpack.c.l.b16 %v287
        %v607 = vunpack.c.l.b16 %v288
        %v608 = vunpack.c.l.b16 %v289
        %v609 = vunpack.c.l.b16 %v290
        %v610 = vunpack.c.l.b16 %v291
        %v611 = vunpack.c.l.b16 %v292
        %v612 = vunpack.c.l.b16 %v293
        %v613 = vunpack.c.l.b16 %v294
        %v614 = vunpack.c.l.b16 %v295
        %v615 = vunpack.c.l.b16 %v296
        %v616 = vunpack.c.l.b16 %v297
        %v617 = vunpack.c.l.b16 %v298
        %v618 = vunpack.c.l.b16 %v299
        %v619 = vunpack.c.l.b16 %v300
        %v620 = vunpack.c.l.b16 %v301
        %v621 = vunpack.c.l.b16 %v302
        %v622 = vunpack.c.l.b16 %v303
        %v623 = vpack.c.b16 %v588, %v587
        %v624 = vpack.c.b16 %v590, %v589
        %v625 = vpack.c.b16 %v592, %v591
        %v626 = vpack.c.b16 %v594, %v593
        %v627 = vpack.c.b16 %v596, %v595
        %v628 = vpack.c.b16 %v598, %v597
        %v629 = vpack.c.b16 %v600, %v599
        %v630 = vpack.c.b16 %v602, %v601
        %v631 = vpack.c.b16 %v604, %v603
        %v632 = vpack.c.b16 %v606, %v605
        %v633 = vpack.c.b16 %v608, %v607
        %v634 = vpack.c.b16 %v610, %v609
        %v635 = vpack.c.b16 %v612, %v611
        %v636 = vpack.c.b16 %v614, %v613
        %v637 = vpack.c.b16 %v616, %v615
        %v638 = vpack.c.b16 %v618, %v617
        %v639 = vpack.c.b16 %v620, %v619
        %v640 = vpack.c.b16 %v622, %v621
        %vm659 = vcmask 261120
        %v661 = vsel %vm659, %v473, 0
        %v664 = vsel %vm659, %v476, 0
        %v667 = vsel %vm659, %v479, 0
        %v670 = vsel %vm659, %v482, 0
        %v673 = vsel %vm659, %v485, 0
        %v676 = vsel %vm659, %v488, 0
        %v679 = vsel %vm659, %v491, 0
        %v682 = vsel %vm659, %v494, 0
        %v685 = vsel %vm659, %v497, 0
        %v688 = vsel %vm659, %v500, 0
        %v691 = vsel %vm659, %v503, 0
        %v694 = vsel %vm659, %v506, 0
        %v697 = vsel %vm659, %v509, 0
        %v700 = vsel %vm659, %v512, 0
        %v703 = vsel %vm659, %v515, 0
        %v706 = vsel %vm659, %v518, 0
        %708 = vmatprep.subr.bf16.mxu0 0
        %709 = vmatpush1.bf16.msra.mxu0 %v630
        %710 = vmatprep.subr.bf16.mxu0 0
        %711 = vmatpush1.bf16.msra.mxu0 %v629
        %712 = vmatprep.subr.bf16.mxu0 0
        %713 = vmatpush1.bf16.msra.mxu0 %v628
        %714 = vmatprep.subr.bf16.mxu0 0
        %715 = vmatpush1.bf16.msra.mxu0 %v627
        %716 = vmatprep.subr.bf16.mxu0 0
        %717 = vmatpush1.bf16.msra.mxu0 %v626
        %718 = vmatprep.subr.bf16.mxu0 0
        %719 = vmatpush1.bf16.msra.mxu0 %v625
        %720 = vmatprep.subr.bf16.mxu0 0
        %721 = vmatpush1.bf16.msra.mxu0 %v624
        %722 = vmatprep.subr.bf16.mxu0 0
        %723 = vmatpush1.bf16.msra.mxu0 %v623
        %724 = vmatprep.subr.bf16.mxu0 0
        %725 = vmatpush2.bf16.msra.mxu0 %v638
        %726 = vmatprep.subr.bf16.mxu0 0
        %727 = vmatpush2.bf16.msra.mxu0 %v637
        %728 = vmatprep.subr.bf16.mxu0 0
        %729 = vmatpush2.bf16.msra.mxu0 %v636
        %730 = vmatprep.subr.bf16.mxu0 0
        %731 = vmatpush2.bf16.msra.mxu0 %v635
        %732 = vmatprep.subr.bf16.mxu0 0
        %733 = vmatpush2.bf16.msra.mxu0 %v634
        %734 = vmatprep.subr.bf16.mxu0 0
        %735 = vmatpush2.bf16.msra.mxu0 %v633
        %736 = vmatprep.subr.bf16.mxu0 0
        %737 = vmatpush2.bf16.msra.mxu0 %v632
        %738 = vmatprep.subr.bf16.mxu0 0
        %739 = vmatpush2.bf16.msra.mxu0 %v631
        %740 = vmatprep.mubr.bf16.mxu0 %v472
        %741 = vmatmul.mubr.bf16.gmra.mxu0 %v471
        %v742 = vpop.f32.mrf.mxu0
        %v743 = vadd.f32 %v309, %v742
        %v744 = vpop.f32.mrf.mxu0
        %v745 = vpop.f32.mrf.mxu0
        %v746 = vadd.f32 %v309, %v745
        %v747 = vpop.f32.mrf.mxu0
        %748 = vmatprep.mubr.bf16.mxu0 %v475
        %749 = vmatmul.mubr.bf16.gmra.mxu0 %v474
        %v750 = vpop.f32.mrf.mxu0
        %v751 = vadd.f32 %v309, %v750
        %v752 = vpop.f32.mrf.mxu0
        %v753 = vpop.f32.mrf.mxu0
        %v754 = vadd.f32 %v309, %v753
        %v755 = vpop.f32.mrf.mxu0
        %756 = vmatprep.mubr.bf16.mxu0 %v478
        %757 = vmatmul.mubr.bf16.gmra.mxu0 %v477
        %v758 = vpop.f32.mrf.mxu0
        %v759 = vadd.f32 %v309, %v758
        %v760 = vpop.f32.mrf.mxu0
        %v761 = vpop.f32.mrf.mxu0
        %v762 = vadd.f32 %v309, %v761
        %v763 = vpop.f32.mrf.mxu0
        %764 = vmatprep.mubr.bf16.mxu0 %v481
        %765 = vmatmul.mubr.bf16.gmra.mxu0 %v480
        %v766 = vpop.f32.mrf.mxu0
        %v767 = vadd.f32 %v309, %v766
        %v768 = vpop.f32.mrf.mxu0
        %v769 = vpop.f32.mrf.mxu0
        %v770 = vadd.f32 %v309, %v769
        %v771 = vpop.f32.mrf.mxu0
        %772 = vmatprep.mubr.bf16.mxu0 %v484
        %773 = vmatmul.mubr.bf16.gmra.mxu0 %v483
        %v774 = vpop.f32.mrf.mxu0
        %v775 = vadd.f32 %v309, %v774
        %v776 = vpop.f32.mrf.mxu0
        %v777 = vpop.f32.mrf.mxu0
        %v778 = vadd.f32 %v309, %v777
        %v779 = vpop.f32.mrf.mxu0
        %780 = vmatprep.mubr.bf16.mxu0 %v487
        %781 = vmatmul.mubr.bf16.gmra.mxu0 %v486
        %v782 = vpop.f32.mrf.mxu0
        %v783 = vadd.f32 %v309, %v782
        %v784 = vpop.f32.mrf.mxu0
        %v785 = vpop.f32.mrf.mxu0
        %v786 = vadd.f32 %v309, %v785
        %v787 = vpop.f32.mrf.mxu0
        %788 = vmatprep.mubr.bf16.mxu0 %v490
        %789 = vmatmul.mubr.bf16.gmra.mxu0 %v489
        %v790 = vpop.f32.mrf.mxu0
        %v791 = vadd.f32 %v309, %v790
        %v792 = vpop.f32.mrf.mxu0
        %v793 = vpop.f32.mrf.mxu0
        %v794 = vadd.f32 %v309, %v793
        %v795 = vpop.f32.mrf.mxu0
        %796 = vmatprep.mubr.bf16.mxu0 %v493
        %797 = vmatmul.mubr.bf16.gmra.mxu0 %v492
        %v798 = vpop.f32.mrf.mxu0
        %v799 = vadd.f32 %v309, %v798
        %v800 = vpop.f32.mrf.mxu0
        %v801 = vpop.f32.mrf.mxu0
        %v802 = vadd.f32 %v309, %v801
        %v803 = vpop.f32.mrf.mxu0
        %804 = vmatprep.mubr.bf16.mxu0 %v496
        %805 = vmatmul.mubr.bf16.gmra.mxu0 %v495
        %v806 = vpop.f32.mrf.mxu0
        %v807 = vadd.f32 %v309, %v806
        %v808 = vpop.f32.mrf.mxu0
        %v809 = vpop.f32.mrf.mxu0
        %v810 = vadd.f32 %v309, %v809
        %v811 = vpop.f32.mrf.mxu0
        %812 = vmatprep.mubr.bf16.mxu0 %v499
        %813 = vmatmul.mubr.bf16.gmra.mxu0 %v498
        %v814 = vpop.f32.mrf.mxu0
        %v815 = vadd.f32 %v309, %v814
        %v816 = vpop.f32.mrf.mxu0
        %v817 = vpop.f32.mrf.mxu0
        %v818 = vadd.f32 %v309, %v817
        %v819 = vpop.f32.mrf.mxu0
        %820 = vmatprep.mubr.bf16.mxu0 %v502
        %821 = vmatmul.mubr.bf16.gmra.mxu0 %v501
        %v822 = vpop.f32.mrf.mxu0
        %v823 = vadd.f32 %v309, %v822
        %v824 = vpop.f32.mrf.mxu0
        %v825 = vpop.f32.mrf.mxu0
        %v826 = vadd.f32 %v309, %v825
        %v827 = vpop.f32.mrf.mxu0
        %828 = vmatprep.mubr.bf16.mxu0 %v505
        %829 = vmatmul.mubr.bf16.gmra.mxu0 %v504
        %v830 = vpop.f32.mrf.mxu0
        %v831 = vadd.f32 %v309, %v830
        %v832 = vpop.f32.mrf.mxu0
        %v833 = vpop.f32.mrf.mxu0
        %v834 = vadd.f32 %v309, %v833
        %v835 = vpop.f32.mrf.mxu0
        %836 = vmatprep.mubr.bf16.mxu0 %v508
        %837 = vmatmul.mubr.bf16.gmra.mxu0 %v507
        %v838 = vpop.f32.mrf.mxu0
        %v839 = vadd.f32 %v309, %v838
        %v840 = vpop.f32.mrf.mxu0
        %v841 = vpop.f32.mrf.mxu0
        %v842 = vadd.f32 %v309, %v841
        %v843 = vpop.f32.mrf.mxu0
        %844 = vmatprep.mubr.bf16.mxu0 %v511
        %845 = vmatmul.mubr.bf16.gmra.mxu0 %v510
        %v846 = vpop.f32.mrf.mxu0
        %v847 = vadd.f32 %v309, %v846
        %v848 = vpop.f32.mrf.mxu0
        %v849 = vpop.f32.mrf.mxu0
        %v850 = vadd.f32 %v309, %v849
        %v851 = vpop.f32.mrf.mxu0
        %852 = vmatprep.mubr.bf16.mxu0 %v514
        %853 = vmatmul.mubr.bf16.gmra.mxu0 %v513
        %v854 = vpop.f32.mrf.mxu0
        %v855 = vadd.f32 %v309, %v854
        %v856 = vpop.f32.mrf.mxu0
        %v857 = vpop.f32.mrf.mxu0
        %v858 = vadd.f32 %v309, %v857
        %v859 = vpop.f32.mrf.mxu0
        %860 = vmatprep.mubr.bf16.mxu0 %v517
        %861 = vmatmul.mubr.bf16.gmra.mxu0 %v516
        %v862 = vpop.f32.mrf.mxu0
        %v863 = vadd.f32 %v309, %v862
        %v864 = vpop.f32.mrf.mxu0
        %v865 = vpop.f32.mrf.mxu0
        %v866 = vadd.f32 %v309, %v865
        %v867 = vpop.f32.mrf.mxu0
        %868 = vdwg.mxu0
        %869 = vmatprep.subr.bf16.mxu0 0
        %870 = vmatpush1.bf16.msra.mxu0 0
        %871 = vmatprep.subr.bf16.mxu0 0
        %872 = vmatpush1.bf16.msra.mxu0 0
        %873 = vmatprep.subr.bf16.mxu0 0
        %874 = vmatpush1.bf16.msra.mxu0 0
        %875 = vmatprep.subr.bf16.mxu0 0
        %876 = vmatpush1.bf16.msra.mxu0 0
        %877 = vmatprep.subr.bf16.mxu0 0
        %878 = vmatpush1.bf16.msra.mxu0 0
        %879 = vmatprep.subr.bf16.mxu0 0
        %880 = vmatpush1.bf16.msra.mxu0 0
        %881 = vmatprep.subr.bf16.mxu0 0
        %882 = vmatpush1.bf16.msra.mxu0 %v640
        %883 = vmatprep.subr.bf16.mxu0 0
        %884 = vmatpush1.bf16.msra.mxu0 %v639
        %885 = vmatprep.subr.bf16.mxu0 0
        %886 = vmatpush2.bf16.msra.mxu0 0
        %887 = vmatprep.subr.bf16.mxu0 0
        %888 = vmatpush2.bf16.msra.mxu0 0
        %889 = vmatprep.subr.bf16.mxu0 0
        %890 = vmatpush2.bf16.msra.mxu0 0
        %891 = vmatprep.subr.bf16.mxu0 0
        %892 = vmatpush2.bf16.msra.mxu0 0
        %893 = vmatprep.subr.bf16.mxu0 0
        %894 = vmatpush2.bf16.msra.mxu0 0
        %895 = vmatprep.subr.bf16.mxu0 0
        %896 = vmatpush2.bf16.msra.mxu0 0
        %897 = vmatprep.subr.bf16.mxu0 0
        %898 = vmatpush2.bf16.msra.mxu0 0
        %899 = vmatprep.subr.bf16.mxu0 0
        %900 = vmatpush2.bf16.msra.mxu0 0
        %901 = vmatprep.mubr.bf16.mxu0 0
        %902 = vmatmul.mubr.bf16.gmra.mxu0 %v661
        %v903 = vpop.f32.mrf.mxu0
        %v904 = vadd.f32 %v743, %v903
        %v905 = vpop.f32.mrf.mxu0
        %v906 = vpop.f32.mrf.mxu0
        %v907 = vadd.f32 %v746, %v906
        %v908 = vpop.f32.mrf.mxu0
        %909 = vmatprep.mubr.bf16.mxu0 0
        %910 = vmatmul.mubr.bf16.gmra.mxu0 %v664
        %v911 = vpop.f32.mrf.mxu0
        %v912 = vadd.f32 %v751, %v911
        %v913 = vpop.f32.mrf.mxu0
        %v914 = vpop.f32.mrf.mxu0
        %v915 = vadd.f32 %v754, %v914
        %v916 = vpop.f32.mrf.mxu0
        %917 = vmatprep.mubr.bf16.mxu0 0
        %918 = vmatmul.mubr.bf16.gmra.mxu0 %v667
        %v919 = vpop.f32.mrf.mxu0
        %v920 = vadd.f32 %v759, %v919
        %v921 = vpop.f32.mrf.mxu0
        %v922 = vpop.f32.mrf.mxu0
        %v923 = vadd.f32 %v762, %v922
        %v924 = vpop.f32.mrf.mxu0
        %925 = vmatprep.mubr.bf16.mxu0 0
        %926 = vmatmul.mubr.bf16.gmra.mxu0 %v670
        %v927 = vpop.f32.mrf.mxu0
        %v928 = vadd.f32 %v767, %v927
        %v929 = vpop.f32.mrf.mxu0
        %v930 = vpop.f32.mrf.mxu0
        %v931 = vadd.f32 %v770, %v930
        %v932 = vpop.f32.mrf.mxu0
        %933 = vmatprep.mubr.bf16.mxu0 0
        %934 = vmatmul.mubr.bf16.gmra.mxu0 %v673
        %v935 = vpop.f32.mrf.mxu0
        %v936 = vadd.f32 %v775, %v935
        %v937 = vpop.f32.mrf.mxu0
        %v938 = vpop.f32.mrf.mxu0
        %v939 = vadd.f32 %v778, %v938
        %v940 = vpop.f32.mrf.mxu0
        %941 = vmatprep.mubr.bf16.mxu0 0
        %942 = vmatmul.mubr.bf16.gmra.mxu0 %v676
        %v943 = vpop.f32.mrf.mxu0
        %v944 = vadd.f32 %v783, %v943
        %v945 = vpop.f32.mrf.mxu0
        %v946 = vpop.f32.mrf.mxu0
        %v947 = vadd.f32 %v786, %v946
        %v948 = vpop.f32.mrf.mxu0
        %949 = vmatprep.mubr.bf16.mxu0 0
        %950 = vmatmul.mubr.bf16.gmra.mxu0 %v679
        %v951 = vpop.f32.mrf.mxu0
        %v952 = vadd.f32 %v791, %v951
        %v953 = vpop.f32.mrf.mxu0
        %v954 = vpop.f32.mrf.mxu0
        %v955 = vadd.f32 %v794, %v954
        %v956 = vpop.f32.mrf.mxu0
        %957 = vmatprep.mubr.bf16.mxu0 0
        %958 = vmatmul.mubr.bf16.gmra.mxu0 %v682
        %v959 = vpop.f32.mrf.mxu0
        %v960 = vadd.f32 %v799, %v959
        %v961 = vpop.f32.mrf.mxu0
        %v962 = vpop.f32.mrf.mxu0
        %v963 = vadd.f32 %v802, %v962
        %v964 = vpop.f32.mrf.mxu0
        %965 = vmatprep.mubr.bf16.mxu0 0
        %966 = vmatmul.mubr.bf16.gmra.mxu0 %v685
        %v967 = vpop.f32.mrf.mxu0
        %v968 = vadd.f32 %v807, %v967
        %v969 = vpop.f32.mrf.mxu0
        %v970 = vpop.f32.mrf.mxu0
        %v971 = vadd.f32 %v810, %v970
        %v972 = vpop.f32.mrf.mxu0
        %973 = vmatprep.mubr.bf16.mxu0 0
        %974 = vmatmul.mubr.bf16.gmra.mxu0 %v688
        %v975 = vpop.f32.mrf.mxu0
        %v976 = vadd.f32 %v815, %v975
        %v977 = vpop.f32.mrf.mxu0
        %v978 = vpop.f32.mrf.mxu0
        %v979 = vadd.f32 %v818, %v978
        %v980 = vpop.f32.mrf.mxu0
        %981 = vmatprep.mubr.bf16.mxu0 0
        %982 = vmatmul.mubr.bf16.gmra.mxu0 %v691
        %v983 = vpop.f32.mrf.mxu0
        %v984 = vadd.f32 %v823, %v983
        %v985 = vpop.f32.mrf.mxu0
        %v986 = vpop.f32.mrf.mxu0
        %v987 = vadd.f32 %v826, %v986
        %v988 = vpop.f32.mrf.mxu0
        %989 = vmatprep.mubr.bf16.mxu0 0
        %990 = vmatmul.mubr.bf16.gmra.mxu0 %v694
        %v991 = vpop.f32.mrf.mxu0
        %v992 = vadd.f32 %v831, %v991
        %v993 = vpop.f32.mrf.mxu0
        %v994 = vpop.f32.mrf.mxu0
        %v995 = vadd.f32 %v834, %v994
        %v996 = vpop.f32.mrf.mxu0
        %997 = vmatprep.mubr.bf16.mxu0 0
        %998 = vmatmul.mubr.bf16.gmra.mxu0 %v697
        %v999 = vpop.f32.mrf.mxu0
        %v1000 = vadd.f32 %v839, %v999
        %v1001 = vpop.f32.mrf.mxu0
        %v1002 = vpop.f32.mrf.mxu0
        %v1003 = vadd.f32 %v842, %v1002
        %v1004 = vpop.f32.mrf.mxu0
        %1005 = vmatprep.mubr.bf16.mxu0 0
        %1006 = vmatmul.mubr.bf16.gmra.mxu0 %v700
        %v1007 = vpop.f32.mrf.mxu0
        %v1008 = vadd.f32 %v847, %v1007
        %v1009 = vpop.f32.mrf.mxu0
        %v1010 = vpop.f32.mrf.mxu0
        %v1011 = vadd.f32 %v850, %v1010
        %v1012 = vpop.f32.mrf.mxu0
        %1013 = vmatprep.mubr.bf16.mxu0 0
        %1014 = vmatmul.mubr.bf16.gmra.mxu0 %v703
        %v1015 = vpop.f32.mrf.mxu0
        %v1016 = vadd.f32 %v855, %v1015
        %v1017 = vpop.f32.mrf.mxu0
        %v1018 = vpop.f32.mrf.mxu0
        %v1019 = vadd.f32 %v858, %v1018
        %v1020 = vpop.f32.mrf.mxu0
        %1021 = vmatprep.mubr.bf16.mxu0 0
        %1022 = vmatmul.mubr.bf16.gmra.mxu0 %v706
        %v1023 = vpop.f32.mrf.mxu0
        %v1024 = vadd.f32 %v863, %v1023
        %v1025 = vpop.f32.mrf.mxu0
        %v1026 = vpop.f32.mrf.mxu0
        %v1027 = vadd.f32 %v866, %v1026
        %v1028 = vpop.f32.mrf.mxu0
        %1029 = vdwg.mxu0
        %s1030 = sld [smem:[#allocation2]]
        %vm1031 = vcmp.ge.f32.partialorder %v904, 0.0
        %vm1032 = vcmp.ge.f32.partialorder %v907, 0.0
        %vm1033 = vcmp.ge.f32.partialorder %v912, 0.0
        %vm1034 = vcmp.ge.f32.partialorder %v915, 0.0
        %vm1035 = vcmp.ge.f32.partialorder %v920, 0.0
        %vm1036 = vcmp.ge.f32.partialorder %v923, 0.0
        %vm1037 = vcmp.ge.f32.partialorder %v928, 0.0
        %vm1038 = vcmp.ge.f32.partialorder %v931, 0.0
        %vm1039 = vcmp.ge.f32.partialorder %v936, 0.0
        %vm1040 = vcmp.ge.f32.partialorder %v939, 0.0
        %vm1041 = vcmp.ge.f32.partialorder %v944, 0.0
        %vm1042 = vcmp.ge.f32.partialorder %v947, 0.0
        %vm1043 = vcmp.ge.f32.partialorder %v952, 0.0
        %vm1044 = vcmp.ge.f32.partialorder %v955, 0.0
        %vm1045 = vcmp.ge.f32.partialorder %v960, 0.0
        %vm1046 = vcmp.ge.f32.partialorder %v963, 0.0
        %vm1047 = vcmp.ge.f32.partialorder %v968, 0.0
        %vm1048 = vcmp.ge.f32.partialorder %v971, 0.0
        %vm1049 = vcmp.ge.f32.partialorder %v976, 0.0
        %vm1050 = vcmp.ge.f32.partialorder %v979, 0.0
        %vm1051 = vcmp.ge.f32.partialorder %v984, 0.0
        %vm1052 = vcmp.ge.f32.partialorder %v987, 0.0
        %vm1053 = vcmp.ge.f32.partialorder %v992, 0.0
        %vm1054 = vcmp.ge.f32.partialorder %v995, 0.0
        %vm1055 = vcmp.ge.f32.partialorder %v1000, 0.0
        %vm1056 = vcmp.ge.f32.partialorder %v1003, 0.0
        %vm1057 = vcmp.ge.f32.partialorder %v1008, 0.0
        %vm1058 = vcmp.ge.f32.partialorder %v1011, 0.0
        %vm1059 = vcmp.ge.f32.partialorder %v1016, 0.0
        %vm1060 = vcmp.ge.f32.partialorder %v1019, 0.0
        %vm1061 = vcmp.ge.f32.partialorder %v1024, 0.0
        %vm1062 = vcmp.ge.f32.partialorder %v1027, 0.0
        %v1063 = vstv %s1030
        %v1064 = vmul.f32 %v1063, %v904
        %v1065 = vmul.f32 %v1063, %v907
        %v1066 = vmul.f32 %v1063, %v912
        %v1067 = vmul.f32 %v1063, %v915
        %v1068 = vmul.f32 %v1063, %v920
        %v1069 = vmul.f32 %v1063, %v923
        %v1070 = vmul.f32 %v1063, %v928
        %v1071 = vmul.f32 %v1063, %v931
        %v1072 = vmul.f32 %v1063, %v936
        %v1073 = vmul.f32 %v1063, %v939
        %v1074 = vmul.f32 %v1063, %v944
        %v1075 = vmul.f32 %v1063, %v947
        %v1076 = vmul.f32 %v1063, %v952
        %v1077 = vmul.f32 %v1063, %v955
        %v1078 = vmul.f32 %v1063, %v960
        %v1079 = vmul.f32 %v1063, %v963
        %v1080 = vmul.f32 %v1063, %v968
        %v1081 = vmul.f32 %v1063, %v971
        %v1082 = vmul.f32 %v1063, %v976
        %v1083 = vmul.f32 %v1063, %v979
        %v1084 = vmul.f32 %v1063, %v984
        %v1085 = vmul.f32 %v1063, %v987
        %v1086 = vmul.f32 %v1063, %v992
        %v1087 = vmul.f32 %v1063, %v995
        %v1088 = vmul.f32 %v1063, %v1000
        %v1089 = vmul.f32 %v1063, %v1003
        %v1090 = vmul.f32 %v1063, %v1008
        %v1091 = vmul.f32 %v1063, %v1011
        %v1092 = vmul.f32 %v1063, %v1016
        %v1093 = vmul.f32 %v1063, %v1019
        %v1094 = vmul.f32 %v1063, %v1024
        %v1095 = vmul.f32 %v1063, %v1027
        %v1096 = vsel %vm1031, %v904, %v1064
        %v1097 = vsel %vm1032, %v907, %v1065
        %v1098 = vsel %vm1033, %v912, %v1066
        %v1099 = vsel %vm1034, %v915, %v1067
        %v1100 = vsel %vm1035, %v920, %v1068
        %v1101 = vsel %vm1036, %v923, %v1069
        %v1102 = vsel %vm1037, %v928, %v1070
        %v1103 = vsel %vm1038, %v931, %v1071
        %v1104 = vsel %vm1039, %v936, %v1072
        %v1105 = vsel %vm1040, %v939, %v1073
        %v1106 = vsel %vm1041, %v944, %v1074
        %v1107 = vsel %vm1042, %v947, %v1075
        %v1108 = vsel %vm1043, %v952, %v1076
        %v1109 = vsel %vm1044, %v955, %v1077
        %v1110 = vsel %vm1045, %v960, %v1078
        %v1111 = vsel %vm1046, %v963, %v1079
        %v1112 = vsel %vm1047, %v968, %v1080
        %v1113 = vsel %vm1048, %v971, %v1081
        %v1114 = vsel %vm1049, %v976, %v1082
        %v1115 = vsel %vm1050, %v979, %v1083
        %v1116 = vsel %vm1051, %v984, %v1084
        %v1117 = vsel %vm1052, %v987, %v1085
        %v1118 = vsel %vm1053, %v992, %v1086
        %v1119 = vsel %vm1054, %v995, %v1087
        %v1120 = vsel %vm1055, %v1000, %v1088
        %v1121 = vsel %vm1056, %v1003, %v1089
        %v1122 = vsel %vm1057, %v1008, %v1090
        %v1123 = vsel %vm1058, %v1011, %v1091
        %v1124 = vsel %vm1059, %v1016, %v1092
        %v1125 = vsel %vm1060, %v1019, %v1093
        %v1126 = vsel %vm1061, %v1024, %v1094
        %v1127 = vsel %vm1062, %v1027, %v1095
        %1128 = vst [vmem:[%s194] sm:$0xff] %v1096
        %1129 = vst [vmem:[%s194 + $0x8] sm:$0xff] %v1097
        %1130 = vst [vmem:[%s194 + $0x10] sm:$0xff] %v1098
        %1131 = vst [vmem:[%s194 + $0x18] sm:$0xff] %v1099
        %1132 = vst [vmem:[%s194 + $0x20] sm:$0xff] %v1100
        %1133 = vst [vmem:[%s194 + $0x28] sm:$0xff] %v1101
        %1134 = vst [vmem:[%s194 + $0x30] sm:$0xff] %v1102
        %1135 = vst [vmem:[%s194 + $0x38] sm:$0xff] %v1103
        %1136 = vst [vmem:[%s194 + $0x40] sm:$0xff] %v1104
        %1137 = vst [vmem:[%s194 + $0x48] sm:$0xff] %v1105
        %1138 = vst [vmem:[%s194 + $0x50] sm:$0xff] %v1106
        %1139 = vst [vmem:[%s194 + $0x58] sm:$0xff] %v1107
        %1140 = vst [vmem:[%s194 + $0x60] sm:$0xff] %v1108
        %1141 = vst [vmem:[%s194 + $0x68] sm:$0xff] %v1109
        %1142 = vst [vmem:[%s194 + $0x70] sm:$0xff] %v1110
        %1143 = vst [vmem:[%s194 + $0x78] sm:$0xff] %v1111
        %1144 = vst [vmem:[%s194 + $0x80] sm:$0xff] %v1112
        %1145 = vst [vmem:[%s194 + $0x88] sm:$0xff] %v1113
        %1146 = vst [vmem:[%s194 + $0x90] sm:$0xff] %v1114
        %1147 = vst [vmem:[%s194 + $0x98] sm:$0xff] %v1115
        %1148 = vst [vmem:[%s194 + $0xa0] sm:$0xff] %v1116
        %1149 = vst [vmem:[%s194 + $0xa8] sm:$0xff] %v1117
        %1150 = vst [vmem:[%s194 + $0xb0] sm:$0xff] %v1118
        %1151 = vst [vmem:[%s194 + $0xb8] sm:$0xff] %v1119
        %1152 = vst [vmem:[%s194 + $0xc0] sm:$0xff] %v1120
        %1153 = vst [vmem:[%s194 + $0xc8] sm:$0xff] %v1121
        %1154 = vst [vmem:[%s194 + $0xd0] sm:$0xff] %v1122
        %1155 = vst [vmem:[%s194 + $0xd8] sm:$0xff] %v1123
        %1156 = vst [vmem:[%s194 + $0xe0] sm:$0xff] %v1124
        %1157 = vst [vmem:[%s194 + $0xe8] sm:$0xff] %v1125
        %1158 = vst [vmem:[%s194 + $0xf0] sm:$0xff] %v1126
        %1159 = vst [vmem:[%s194 + $0xf8] sm:$0xff] %v1127
        %s1160 = sand.u32 %s116, 1
        %s1161 = scalar_lea.sflag [#allocation4], %s1160
        %s1162 = sand.u32 %s116, 1
        %s1163 = smul.addr %s1162, 256
        %s1164 = scalar_lea.vmem [#allocation3], %s1163
        // Predicated region
        $region37: #{tpu_custom_call.1} parent=35 // pred_check
          %p1165 = pneg %p126
        $region38: #{tpu_custom_call.1} parent=35 // pred_check_branch
          %1167 = sbr.rel (%p1165) target = $region40
        $region39: #{tpu_custom_call.1} parent=35 // pred_region
          %s1168 = smul.u32 32, %s19
          %s1170 = ssub.s32 4096, 4096
          %1171 = vsyncadd %s1161, %s1170
          %s1172 = smul.addr %s1168, 128
          %s1173 = scalar_lea.hbm %s4, %s1172
          %s1174 = sshll.u32 %s1164, 4
          %s1175 = int_to_ptr.vmem [resolvable:$true] %s1174
          %1180 = dma.vmem_to_hbm [thread:$0]  %s1175, 4096, %s1173, %s1161, 128, 128, 8
        $region40: #{tpu_custom_call.1} parent=35 // pred_fallthru
          _
      $region36: #{tpu_custom_call.1} parent=5 // pred_fallthru
        _
      %p1181 = scmp.le.s32.totalorder 2, %s14
      // Predicated region
      $region41: #{tpu_custom_call.1} parent=5 // pred_check
        %p1182 = pneg %p1181
      $region42: #{tpu_custom_call.1} parent=5 // pred_check_branch
        %1184 = sbr.rel (%p1182) target = $region44
      $region43: #{tpu_custom_call.1} parent=5 // pred_region
        %s1185 = ssub.s32 %s14, 2
        // Predicated region
        $region45: #{tpu_custom_call.1} parent=43 // pred_check
          %p1186 = pneg %p132
        $region46: #{tpu_custom_call.1} parent=43 // pred_check_branch
          %1188 = sbr.rel (%p1186) target = $region48
        $region47: #{tpu_custom_call.1} parent=43 // pred_region
          %s1189 = sand.u32 %s117, 1
          %s1190 = scalar_lea.sflag [#allocation4], %s1189
          %s1191 = sand.u32 %s117, 1
          %s1192 = smul.addr %s1191, 256
          %s1193 = scalar_lea.vmem [#allocation3], %s1192
          %1194 = dma.done %s1190, 4096
        $region48: #{tpu_custom_call.1} parent=43 // pred_fallthru
          _
      $region44: #{tpu_custom_call.1} parent=5 // pred_fallthru
        _
    $region6: #{tpu_custom_call.1} parent=1 // loop_footer
      %s18 = sadd.s32 1, %s14
    $region7: #{tpu_custom_call.1} parent=1 // loop_footer_branch
      %13 = sbr.rel target = $region3
    $region8: #{tpu_custom_call.1} parent=1 // loop_exit
      _
    %1195 = vsyncpa [#allocation4], 1
    %s1196 = scalar_lea.sflag [#allocation4], 1
    %1197 = vsyncpa %s1196, 1

</llo_original>
